<compile_context>
chip_gen: v6e
topology: v6e:2x2x1
jax: 0.10.0
libtpu: 0.0.40
codegen_flags: <defaults>
</compile_context>

<pallas_src>
import functools

import numpy as np
import jax
import jax.numpy as jnp
from jax import lax
from jax.experimental import pallas as pl
from jax.experimental.pallas import tpu as pltpu


# ----------------------------- parameter setup ------------------------------
def _round_up(x: int, m: int) -> int:
    return ((x + m - 1) // m) * m


def _gaussian_kernel1d(kernel_size: int, sigma: float) -> np.ndarray:
    # Matches kornia's get_gaussian_kernel1d for odd kernel sizes (sum == 1).
    x = np.arange(kernel_size, dtype=np.float64) - kernel_size // 2
    g = np.exp(-(x ** 2) / (2.0 * float(sigma) ** 2))
    return g / g.sum()  # float64


def _nearest_matrix(out_size: int, in_size: int) -> np.ndarray:
    # PyTorch mode='nearest': src = floor(dst * in/out), clamped.
    idx = np.minimum((np.arange(out_size) * in_size) // out_size, in_size - 1)
    return np.eye(in_size, dtype=np.float64)[idx]  # (out_size, in_size)


def _reflect_matrix(size: int, pad: int) -> np.ndarray:
    # PyTorch F.pad(mode='reflect') (no edge repeat); requires pad < size.
    p = np.arange(size + 2 * pad) - pad
    p = np.where(p < 0, -p, p)
    p = np.where(p >= size, 2 * (size - 1) - p, p)
    return np.eye(size, dtype=np.float64)[p]  # (size + 2*pad, size)


def _band_matrix(size: int, g: np.ndarray) -> np.ndarray:
    # V[i + k, i] = g[k]  ->  (V^T @ x_pad)[i] = sum_k g[k] * x_pad[i + k]
    K = g.shape[0]
    V = np.zeros((size + K - 1, size), dtype=np.float64)
    for k in range(K):
        V[np.arange(size) + k, np.arange(size)] += g[k]
    return V  # (size + K - 1, size)


def _choose_h_tile(out_h: int) -> int:
    """Output-row tile: multiple of 8 (or full), >= 2 tiles when possible."""
    if out_h <= 128:
        if out_h >= 16 and out_h % 16 == 0:
            return out_h // 2          # two tiles, still a multiple of 8
        return out_h                   # full extent (always legal)
    n_tiles = max(2, -(-out_h // 256))  # target <= ~256 rows per tile
    th = _round_up(-(-out_h // n_tiles), 8)
    return min(th, out_h)


def _fit_h_tile_to_vmem(th: int, out_h: int, out_w: int, h: int, w: int) -> int:
    """Shrink the H tile until the double-buffered blocks fit a ~12 MiB budget
    (conservative: fits v5e's 16 MiB scoped default and v7x's 32 MiB)."""
    def vmem_bytes(t):
        # x block + L tile + Rt + out tile, all f32, double-buffered.
        return 2 * 4 * (h * w + t * h + w * out_w + t * out_w)
    while th > 8 and vmem_bytes(th) > (12 << 20):
        th = max(8, _round_up(th // 2, 8))
    return th


# --------------------------------- kernel -----------------------------------
def _anomaly_map_kernel(x_ref, l_ref, rt_ref, o_ref):
    # x_ref : (1, 1, h, w)   raw patch scores for one image
    # l_ref : (TH, h)        fused row operator tile (upsample + reflect + blur)
    # rt_ref: (w, W)         fused column operator, pre-transposed
    # o_ref : (1, 1, TH, W)  anomaly-map tile (exact width, masked store)
    x = x_ref[0, 0].astype(jnp.float32)                               # (h, w)
    # Row blur / upsample first so every grid step is independent.
    t = jnp.dot(l_ref[...], x, preferred_element_type=jnp.float32)    # (TH, w)
    out = jnp.dot(t, rt_ref[...], preferred_element_type=jnp.float32)  # (TH, W)
    o_ref[0, 0] = out.astype(o_ref.dtype)


# ------------------------------ jitted forward -------------------------------
@functools.partial(jax.jit, static_argnames=("h_tile",))
def _anomaly_map_forward(patch_scores, l_op, rt_op, *, h_tile):
    B, C, h, w = patch_scores.shape
    out_h = l_op.shape[0]
    out_w = rt_op.shape[1]
    th = h_tile
    n_h = pl.cdiv(out_h, th)

    flops = 2 * B * (out_h * h * w + out_h * w * out_w)
    bytes_accessed = 4 * (B * h * w + out_h * h + w * out_w + B * out_h * out_w)

    return pl.pallas_call(
        _anomaly_map_kernel,
        grid=(B, n_h),
        in_specs=[
            # Full-extent trailing dims are legal even when not (8,128) aligned.
            pl.BlockSpec((1, 1, h, w), lambda b, hi: (b, 0, 0, 0)),
            pl.BlockSpec((th, h), lambda b, hi: (hi, 0)),
            pl.BlockSpec((w, out_w), lambda b, hi: (0, 0)),
        ],
        out_specs=pl.BlockSpec((1, 1, th, out_w), lambda b, hi: (b, 0, hi, 0)),
        out_shape=jax.ShapeDtypeStruct((B, 1, out_h, out_w), patch_scores.dtype),
        compiler_params=pltpu.CompilerParams(
            dimension_semantics=("parallel", "parallel")),
        cost_estimate=pl.CostEstimate(
            flops=flops, transcendentals=0, bytes_accessed=bytes_accessed),
    )(patch_scores, l_op, rt_op)


# -------------------------------- wrapper ------------------------------------
class AnomalyMapGenerator:
    """JAX/Pallas port of hamacho PatchCore AnomalyMapGenerator."""

    def __init__(self, input_size, sigma: int = 4) -> None:
        self.input_size = (int(input_size[0]), int(input_size[1]))
        self.sigma = float(sigma)
        self.kernel_size = 2 * int(4.0 * self.sigma + 0.5) + 1
        self.pad = self.kernel_size // 2
        H, W = self.input_size
        if self.pad >= H or self.pad >= W:
            raise ValueError(
                f"reflect pad {self.pad} must be < input_size {self.input_size}")
        self._g = _gaussian_kernel1d(self.kernel_size, self.sigma)  # float64
        self._op_cache = {}  # (h, w) -> (L, Rt, h_tile)

    def _operators(self, h: int, w: int):
        key = (h, w)
        ops = self._op_cache.get(key)
        if ops is None:
            H, W = self.input_size
            # Compose the fused operators in float64, then cast to f32 (exact
            # sizes -- no contraction/lane padding needed anywhere).
            Vh = _band_matrix(H, self._g)  # (H + 2*pad, H)
            Vw = _band_matrix(W, self._g)  # (W + 2*pad, W)
            L = Vh.T @ _reflect_matrix(H, self.pad) @ _nearest_matrix(H, h)  # (H, h)
            R = Vw.T @ _reflect_matrix(W, self.pad) @ _nearest_matrix(W, w)  # (W, w)

            th = _fit_h_tile_to_vmem(_choose_h_tile(H), H, W, h, w)
            ops = (jnp.asarray(L.astype(np.float32)),
                   jnp.asarray(R.T.astype(np.float32)),
                   int(th))
            self._op_cache[key] = ops
        return ops

    def __call__(self, patch_scores: jnp.ndarray) -> jnp.ndarray:
        B, C, h, w = patch_scores.shape
        assert C == 1, "GaussianBlur2d is constructed with channels=1"
        l_op, rt_op, h_tile = self._operators(h, w)
        return _anomaly_map_forward(patch_scores, l_op, rt_op, h_tile=h_tile)


# ------------------------ plain-JAX reference (check) ------------------------
def _reference_forward(patch_scores, input_size, sigma):
    H, W = input_size
    B, C, h, w = patch_scores.shape
    kernel_size = 2 * int(4.0 * sigma + 0.5) + 1
    pad = kernel_size // 2
    iy = np.minimum((np.arange(H) * h) // H, h - 1)
    ix = np.minimum((np.arange(W) * w) // W, w - 1)
    up = patch_scores[:, :, iy][:, :, :, ix]                       # nearest upsample
    xpad = jnp.pad(up, ((0, 0), (0, 0), (pad, pad), (pad, pad)), mode="reflect")
    g = jnp.asarray(_gaussian_kernel1d(kernel_size, sigma).astype(np.float32))
    k2 = jnp.outer(g, g)[None, None]                               # (1,1,K,K), sum==1
    return lax.conv_general_dilated(
        xpad, k2, (1, 1), "VALID", dimension_numbers=("NCHW", "OIHW", "NCHW")
    )


if __name__ == "__main__":
    key = jax.random.PRNGKey(0)
    B, C, h, w = 2, 1, 16, 16
    input_size = (64, 64)          # reflect pad (16) must be < input_size dims
    sigma = 4

    patch_scores = jax.random.uniform(key, (B, C, h, w), dtype=jnp.float32)

    gen = AnomalyMapGenerator(input_size=input_size, sigma=sigma)
    anomaly_map = gen(patch_scores)                 # compiles once (jit cached)
    anomaly_map = gen(patch_scores)                 # cached fast path
    anomaly_map = jax.block_until_ready(anomaly_map)

    assert anomaly_map.shape == (B, 1, input_size[0], input_size[1])
    assert anomaly_map.dtype == jnp.float32

    ref = jax.block_until_ready(_reference_forward(patch_scores, input_size, sigma))
    np.testing.assert_allclose(
        np.asarray(anomaly_map), np.asarray(ref), rtol=1e-4, atol=1e-5
    )
    print("KERNEL_OK")
</pallas_src>

<mosaic_0001>
module attributes {stable_mosaic.version = 11 : i64} {
  func.func @_anomaly_map_kernel(%arg0: i32, %arg1: i32, %arg2: memref<1x1x16x16xf32, #tpu.memory_space<vmem>>, %arg3: memref<32x16xf32, #tpu.memory_space<vmem>>, %arg4: memref<16x64xf32, #tpu.memory_space<vmem>>, %arg5: memref<1x1x32x64xf32, #tpu.memory_space<vmem>>) attributes {dimension_semantics = [#tpu.dimension_semantics<parallel>, #tpu.dimension_semantics<parallel>], iteration_bounds = array<i64: 2, 2>, scalar_prefetch = 0 : i64, scratch_operands = 0 : i64, tpu.core_type = #tpu.core_type<tc>, window_params = [{transform_indices = @transform_0, window_bounds = array<i64: 1, 1, 16, 16>}, {transform_indices = @transform_1, window_bounds = array<i64: 32, 16>}, {pipeline_mode = #tpu.pipeline_mode<synchronous>, transform_indices = @transform_2, window_bounds = array<i64: 16, 64>}, {transform_indices = @transform_3, window_bounds = array<i64: 1, 1, 32, 64>}]} {
    %c0 = arith.constant 0 : index
    %c0_0 = arith.constant 0 : index
    %c0_1 = arith.constant 0 : index
    %c0_2 = arith.constant 0 : index
    %0 = vector.load %arg2[%c0, %c0_0, %c0_1, %c0_2] : memref<1x1x16x16xf32, #tpu.memory_space<vmem>>, vector<1x1x16x16xf32>
    %1 = vector.shape_cast %0 : vector<1x1x16x16xf32> to vector<16x16xf32>
    %c0_3 = arith.constant 0 : index
    %c0_4 = arith.constant 0 : index
    %2 = vector.load %arg3[%c0_3, %c0_4] : memref<32x16xf32, #tpu.memory_space<vmem>>, vector<32x16xf32>
    %cst = arith.constant dense<0.000000e+00> : vector<32x16xf32>
    %3 = tpu.matmul %2, %1, %cst {dimension_numbers = #tpu.dot_dimension_numbers<[1], [0], [0], [1], [0, 0, 1, 1], [], []>} : vector<32x16xf32>, vector<16x16xf32>, vector<32x16xf32> -> vector<32x16xf32>
    %c0_5 = arith.constant 0 : index
    %c0_6 = arith.constant 0 : index
    %4 = vector.load %arg4[%c0_5, %c0_6] : memref<16x64xf32, #tpu.memory_space<vmem>>, vector<16x64xf32>
    %cst_7 = arith.constant dense<0.000000e+00> : vector<32x64xf32>
    %5 = tpu.matmul %3, %4, %cst_7 {dimension_numbers = #tpu.dot_dimension_numbers<[1], [0], [0], [1], [0, 0, 1, 1], [], []>} : vector<32x16xf32>, vector<16x64xf32>, vector<32x64xf32> -> vector<32x64xf32>
    %c0_8 = arith.constant 0 : index
    %c0_9 = arith.constant 0 : index
    %c0_10 = arith.constant 0 : index
    %c0_11 = arith.constant 0 : index
    %6 = vector.load %arg5[%c0_8, %c0_9, %c0_10, %c0_11] : memref<1x1x32x64xf32, #tpu.memory_space<vmem>>, vector<1x1x32x64xf32>
    %7 = vector.shape_cast %6 : vector<1x1x32x64xf32> to vector<32x64xf32>
    %8 = vector.shape_cast %5 : vector<32x64xf32> to vector<1x1x32x64xf32>
    tpu.vector_store %arg5[%c0_8, %c0_9, %c0_10, %c0_11], %8 {strides = array<i32>} : memref<1x1x32x64xf32, #tpu.memory_space<vmem>>, vector<1x1x32x64xf32>,
    return
  }
  func.func @transform_0(%arg0: i32, %arg1: i32) -> (i32, i32, i32, i32) {
    %c0_i32 = arith.constant 0 : i32
    %c0_i32_0 = arith.constant 0 : i32
    %c0_i32_1 = arith.constant 0 : i32
    %c0_i32_2 = arith.constant 0 : i32
    return %arg0, %c0_i32, %c0_i32_0, %c0_i32_1 : i32, i32, i32, i32
  }
  func.func @transform_1(%arg0: i32, %arg1: i32) -> (i32, i32) {
    %c0_i32 = arith.constant 0 : i32
    %c0_i32_0 = arith.constant 0 : i32
    return %arg1, %c0_i32 : i32, i32
  }
  func.func @transform_2(%arg0: i32, %arg1: i32) -> (i32, i32) {
    %c0_i32 = arith.constant 0 : i32
    %c0_i32_0 = arith.constant 0 : i32
    %c0_i32_1 = arith.constant 0 : i32
    return %c0_i32, %c0_i32_0 : i32, i32
  }
  func.func @transform_3(%arg0: i32, %arg1: i32) -> (i32, i32, i32, i32) {
    %c0_i32 = arith.constant 0 : i32
    %c0_i32_0 = arith.constant 0 : i32
    %c0_i32_1 = arith.constant 0 : i32
    return %arg0, %c0_i32, %arg1, %c0_i32_0 : i32, i32, i32, i32
  }
}

</mosaic_0001>

<llo_original>
// kernel: _anomaly_map_forward.1
$region0: #{_anomaly_map_forward.1}
  #allocation0 [shape = 'u32[]', space=smem, size = 0x4, offset = 0x4, fixed_abs, tag = 'smem constant byte address 0x4 - core index']
  #allocation1 [shape = 'u32[144,128]{1,0:T(1,128)}', space=vmem, size = 0x12000, scoped, tag = 'internal scratch']
  %s0 = inlined_call_operand.vmem [shape: f32[2,1,16,16], index: 0, kind: input, shape index: {}]
  %s1 = inlined_call_operand.vmem [shape: f32[64,16], index: 1, kind: input, shape index: {}]
  %s2 = inlined_call_operand.vmem [shape: f32[16,64], index: 2, kind: input, shape index: {}]
  %s3 = inlined_call_operand.hbm [shape: f32[2,1,64,64], index: 3, kind: output, shape index: {}]
  %s4 = sld [smem:[#allocation0]]
  $region45: #{_anomaly_map_forward.1} parent=0
    _
  %s6 = ssub.s32 1, %s4
  %s7 = scalar_select 0, %s6, %s4
  $region1: #{_anomaly_map_forward.1} parent=0
    #allocation2 [shape = 'u8[32768]{0}', space=vmem, size = 0x8000, scoped, tag = 'output window, operand 0']
    #allocation3 [shape = 's32[2]{0}', space=sflag, size = 0x8, scoped, tag = 'scoped memory for _anomaly_map_forward.1']
    %8 = vsyncpa [#allocation3], 0
    %s9 = scalar_lea.sflag [#allocation3], 1
    %10 = vsyncpa %s9, 0
    loop: start=0, step=1, limit=6
    $region2: #{_anomaly_map_forward.1} parent=1 // loop_pre_header
      _
    $region3: #{_anomaly_map_forward.1} parent=1 // loop_header
      %s12 = sphi 0, %s16
      %p13 = scmp.ge.s32.totalorder %s12, 6
      %s19 = sphi 0, %s31
      %s20 = sphi 0, %s27
      %s21 = sphi 0, %s19
      %s22 = sphi 0, %s20
      %s23 = sphi 0, %s21
      %s24 = sphi 0, %s22
      %s34 = sphi 0, %s36
      %s37 = sphi 0, %s34
      %s38 = sphi 0, %s37
      %s54 = sphi 0, %s38
      %s60 = sphi 0, %s62
      %s63 = sphi 0, %s60
      %s64 = sphi 0, %s63
      %s80 = sphi 0, %s64
      %s84 = sphi 0, %s84
      %s86 = sphi 0, %s84
      %s87 = sphi 0, %s86
      %s101 = sphi 0, %s87
      %s109 = sphi 0, %s111
      %s112 = sphi 0, %s109
      %s113 = sphi 0, %s112
      %s129 = sphi 0, %s113
    $region4: #{_anomaly_map_forward.1} parent=1 // loop_header_branch
      %15 = sbr.rel (%p13) target = $region8
    $region5: #{_anomaly_map_forward.1} parent=1 // loop_body
      %s17 = ssub.s32 %s12, 1
      %s18 = ssub.s32 %s12, 2
      %s25 = sadd.s32 1, %s20
      %p26 = scmp.ge.s32.totalorder %s25, 2
      %s27 = scalar_select %p26, 0, %s25
      %s28 = sadd.s32 1, %s19
      %s29 = scalar_select %p26, %s28, %s19
      %p30 = scmp.ge.s32.totalorder %s29, 2
      %s31 = scalar_select %p30, 0, %s29
      %s32 = ssub.s32 %s19, %s31
      %p33 = scmp.eq.s32.totalorder %s32, 0
      %s35 = sadd.s32 %s34, 1
      %s36 = scalar_select %p33, %s34, %s35
      %p39 = pneg %p33
      %p40 = scmp.eq.s32.totalorder %s12, 3
      %p41 = por %p39, %p40
      %p42 = scmp.ne.s32.totalorder %s34, %s37
      %p43 = scmp.eq.s32.totalorder %s12, 0
      %p44 = por %p42, %p43
      %p45 = scmp.ne.s32.totalorder %s34, %s37
      %p46 = scmp.eq.s32.totalorder %s17, 3
      %p47 = por %p45, %p46
      %p48 = scmp.ne.s32.totalorder %s37, %s38
      %p49 = scmp.eq.s32.totalorder %s17, 0
      %p50 = por %p48, %p49
      %p51 = scmp.ne.s32.totalorder %s37, %s38
      %p52 = scmp.eq.s32.totalorder %s18, 3
      %p53 = por %p51, %p52
      %p55 = scmp.ne.s32.totalorder %s38, %s54
      %p56 = scmp.eq.s32.totalorder %s18, 0
      %p57 = por %p55, %p56
      %s58 = ssub.s32 %s20, %s27
      %p59 = scmp.eq.s32.totalorder %s58, 0
      %s61 = sadd.s32 %s60, 1
      %s62 = scalar_select %p59, %s60, %s61
      %p65 = pneg %p59
      %p66 = scmp.eq.s32.totalorder %s12, 3
      %p67 = por %p65, %p66
      %p68 = scmp.ne.s32.totalorder %s60, %s63
      %p69 = scmp.eq.s32.totalorder %s12, 0
      %p70 = por %p68, %p69
      %p71 = scmp.ne.s32.totalorder %s60, %s63
      %p72 = scmp.eq.s32.totalorder %s17, 3
      %p73 = por %p71, %p72
      %p74 = scmp.ne.s32.totalorder %s63, %s64
      %p75 = scmp.eq.s32.totalorder %s17, 0
      %p76 = por %p74, %p75
      %p77 = scmp.ne.s32.totalorder %s63, %s64
      %p78 = scmp.eq.s32.totalorder %s18, 3
      %p79 = por %p77, %p78
      %p81 = scmp.ne.s32.totalorder %s64, %s80
      %p82 = scmp.eq.s32.totalorder %s18, 0
      %p83 = por %p81, %p82
      %s85 = sadd.s32 %s84, 1
      %p88 = scmp.eq.s32.totalorder %s12, 3
      %p89 = scmp.ne.s32.totalorder %s84, %s86
      %p90 = scmp.eq.s32.totalorder %s12, 0
      %p91 = por %p89, %p90
      %p92 = scmp.ne.s32.totalorder %s84, %s86
      %p93 = scmp.eq.s32.totalorder %s17, 3
      %p94 = por %p92, %p93
      %p95 = scmp.ne.s32.totalorder %s86, %s87
      %p96 = scmp.eq.s32.totalorder %s17, 0
      %p97 = por %p95, %p96
      %p98 = scmp.ne.s32.totalorder %s86, %s87
      %p99 = scmp.eq.s32.totalorder %s18, 3
      %p100 = por %p98, %p99
      %p102 = scmp.ne.s32.totalorder %s87, %s101
      %p103 = scmp.eq.s32.totalorder %s18, 0
      %p104 = por %p102, %p103
      %s105 = ssub.s32 %s19, %s31
      %s106 = ssub.s32 %s20, %s27
      %s107 = sor.u32 %s105, %s106
      %p108 = scmp.eq.s32.totalorder %s107, 0
      %s110 = sadd.s32 %s109, 1
      %s111 = scalar_select %p108, %s109, %s110
      %p114 = pneg %p108
      %p115 = scmp.eq.s32.totalorder %s12, 3
      %p116 = por %p114, %p115
      %p117 = scmp.ne.s32.totalorder %s109, %s112
      %p118 = scmp.eq.s32.totalorder %s12, 0
      %p119 = por %p117, %p118
      %p120 = scmp.ne.s32.totalorder %s109, %s112
      %p121 = scmp.eq.s32.totalorder %s17, 3
      %p122 = por %p120, %p121
      %p123 = scmp.ne.s32.totalorder %s112, %s113
      %p124 = scmp.eq.s32.totalorder %s17, 0
      %p125 = por %p123, %p124
      %p126 = scmp.ne.s32.totalorder %s112, %s113
      %p127 = scmp.eq.s32.totalorder %s18, 3
      %p128 = por %p126, %p127
      %p130 = scmp.ne.s32.totalorder %s113, %s129
      %p131 = scmp.eq.s32.totalorder %s18, 0
      %p132 = por %p130, %p131
      %p133 = scmp.le.s32.totalorder 1, %s12
      %p134 = scmp.lt.s32.totalorder %s12, 5
      %p135 = pnand %p133, %p134
      %p136 = pneg %p135
      // Predicated region
      $region9: #{_anomaly_map_forward.1} parent=5 // pred_check
        _
      $region10: #{_anomaly_map_forward.1} parent=5 // pred_check_branch
        %138 = sbr.rel (%p135) target = $region12
      $region11: #{_anomaly_map_forward.1} parent=5 // pred_region
        %s139 = ssub.s32 %s12, 1
        // Predicated region
        $region13: #{_anomaly_map_forward.1} parent=11 // pred_check
          %p140 = pneg %p97
        $region14: #{_anomaly_map_forward.1} parent=11 // pred_check_branch
          %142 = sbr.rel (%p140) target = $region16
        $region15: #{_anomaly_map_forward.1} parent=11 // pred_region
          _
        $region16: #{_anomaly_map_forward.1} parent=11 // pred_fallthru
          _
      $region12: #{_anomaly_map_forward.1} parent=5 // pred_fallthru
        _
      %p143 = scmp.lt.s32.totalorder %s12, 4
      // Predicated region
      $region17: #{_anomaly_map_forward.1} parent=5 // pred_check
        %p144 = pneg %p143
      $region18: #{_anomaly_map_forward.1} parent=5 // pred_check_branch
        %146 = sbr.rel (%p144) target = $region20
      $region19: #{_anomaly_map_forward.1} parent=5 // pred_region
        // Predicated region
        $region21: #{_anomaly_map_forward.1} parent=19 // pred_check
          %p147 = pneg %p44
        $region22: #{_anomaly_map_forward.1} parent=19 // pred_check_branch
          %149 = sbr.rel (%p147) target = $region24
        $region23: #{_anomaly_map_forward.1} parent=19 // pred_region
          %p150 = scmp.lt.s32.totalorder %s19, 1
          %s151 = scalar_select %p150, %s19, 1
          %s152 = smul.addr %s151, 2
          %s153 = smul.addr %s152, 8
          %s154 = scalar_lea.vmem %s0, %s153
        $region24: #{_anomaly_map_forward.1} parent=19 // pred_fallthru
          _
        // Predicated region
        $region25: #{_anomaly_map_forward.1} parent=19 // pred_check
          %p155 = pneg %p70
        $region26: #{_anomaly_map_forward.1} parent=19 // pred_check_branch
          %157 = sbr.rel (%p155) target = $region28
        $region27: #{_anomaly_map_forward.1} parent=19 // pred_region
          %s158 = smul.u32 4, %s20
          %p159 = scmp.lt.s32.totalorder %s158, 7
          %s160 = scalar_select %p159, %s158, 7
          %s161 = smul.addr %s160, 8
          %s162 = scalar_lea.vmem %s1, %s161
          %s163 = smul.u32 4, %s20
        $region28: #{_anomaly_map_forward.1} parent=19 // pred_fallthru
          _
      $region20: #{_anomaly_map_forward.1} parent=5 // pred_fallthru
        _
      %p164 = scmp.le.s32.totalorder 1, %s12
      %p165 = scmp.lt.s32.totalorder %s12, 5
      %p166 = pnand %p164, %p165
      %p167 = pneg %p166
      // Predicated region
      $region29: #{_anomaly_map_forward.1} parent=5 // pred_check
        _
      $region30: #{_anomaly_map_forward.1} parent=5 // pred_check_branch
        %169 = sbr.rel (%p166) target = $region32
      $region31: #{_anomaly_map_forward.1} parent=5 // pred_region
        %s170 = ssub.s32 %s12, 1
        %p171 = scmp.lt.s32.totalorder %s21, 1
        %s172 = scalar_select %p171, %s21, 1
        %s173 = smul.addr %s172, 2
        %s174 = smul.addr %s173, 8
        %s175 = scalar_lea.vmem %s0, %s174
        %p176 = pneg %p50
        %p177 = pneg %p47
        %s178 = smul.u32 4, %s22
        %p179 = scmp.lt.s32.totalorder %s178, 7
        %s180 = scalar_select %p179, %s178, 7
        %s181 = smul.addr %s180, 8
        %s182 = scalar_lea.vmem %s1, %s181
        %p183 = pneg %p76
        %p184 = pneg %p73
        %p185 = pneg %p97
        %p186 = pneg %p94
        %p187 = pneg %p125
        %p188 = pneg %p122
        %s189 = sand.u32 %s112, 1
        %s190 = scalar_lea.sflag [#allocation3], %s189
        %s191 = sand.u32 %s112, 1
        %s192 = smul.addr %s191, 32
        %s193 = scalar_lea.vmem [#allocation2], %s192
        %p194 = scmp.lt.s32.totalorder %s21, 1
        %s195 = scalar_select %p194, %s21, 1
        %s196 = smul.addr %s195, 2
        %s197 = smul.addr %s196, 8
        %s198 = scalar_lea.vmem %s0, %s197
        %s199 = smul.u32 4, %s22
        %p200 = scmp.lt.s32.totalorder %s199, 7
        %s201 = scalar_select %p200, %s199, 7
        %s202 = smul.addr %s201, 8
        %s203 = scalar_lea.vmem %s1, %s202
        %s204 = smul.u32 4, %s22
        %s205 = smul.u32 4, %s22
        %v206 = vld [vmem:[%s198] sm:$0xff]
        %v207 = vld [vmem:[%s198 + $0x8] sm:$0xff]
        %v208 = vld [vmem:[%s203] sm:$0xff]
        %v209 = vld [vmem:[%s203 + $0x8] sm:$0xff]
        %v210 = vld [vmem:[%s203 + $0x10] sm:$0xff]
        %v211 = vld [vmem:[%s203 + $0x18] sm:$0xff]
        %vm212 = vcmask 130048
        %v214 = vsel %vm212, %v208, 0
        %v217 = vsel %vm212, %v209, 0
        %v220 = vsel %vm212, %v210, 0
        %v223 = vsel %vm212, %v211, 0
        %225 = vmatprep.subr.mxu0 0.0
        %226 = vmatpush1.msra.mxu0 0.0
        %227 = vmatprep.subr.mxu0 0.0
        %228 = vmatpush1.msra.mxu0 0.0
        %229 = vmatprep.subr.mxu0 0.0
        %230 = vmatpush1.msra.mxu0 0.0
        %231 = vmatprep.subr.mxu0 0.0
        %232 = vmatpush1.msra.mxu0 0.0
        %233 = vmatprep.subr.mxu0 0.0
        %234 = vmatpush1.msra.mxu0 0.0
        %235 = vmatprep.subr.mxu0 0.0
        %236 = vmatpush1.msra.mxu0 0.0
        %237 = vmatprep.subr.mxu0 0.0
        %238 = vmatpush1.msra.mxu0 0.0
        %239 = vmatprep.subr.mxu0 0.0
        %240 = vmatpush1.msra.mxu0 0.0
        %241 = vmatprep.subr.mxu0 0.0
        %242 = vmatpush1.msra.mxu0 0.0
        %243 = vmatprep.subr.mxu0 0.0
        %244 = vmatpush1.msra.mxu0 0.0
        %245 = vmatprep.subr.mxu0 0.0
        %246 = vmatpush1.msra.mxu0 0.0
        %247 = vmatprep.subr.mxu0 0.0
        %248 = vmatpush1.msra.mxu0 0.0
        %249 = vmatprep.subr.mxu0 0.0
        %250 = vmatpush1.msra.mxu0 0.0
        %251 = vmatprep.subr.mxu0 0.0
        %252 = vmatpush1.msra.mxu0 0.0
        %253 = vmatprep.subr.mxu0 0.0
        %254 = vmatpush1.msra.mxu0 %v207
        %255 = vmatprep.subr.mxu0 0.0
        %256 = vmatpush1.msra.mxu0 %v206
        %257 = vmatprep.subr.mxu0 0.0
        %258 = vmatpush2.msra.mxu0 0.0
        %259 = vmatprep.subr.mxu0 0.0
        %260 = vmatpush2.msra.mxu0 0.0
        %261 = vmatprep.subr.mxu0 0.0
        %262 = vmatpush2.msra.mxu0 0.0
        %263 = vmatprep.subr.mxu0 0.0
        %264 = vmatpush2.msra.mxu0 0.0
        %265 = vmatprep.subr.mxu0 0.0
        %266 = vmatpush2.msra.mxu0 0.0
        %267 = vmatprep.subr.mxu0 0.0
        %268 = vmatpush2.msra.mxu0 0.0
        %269 = vmatprep.subr.mxu0 0.0
        %270 = vmatpush2.msra.mxu0 0.0
        %271 = vmatprep.subr.mxu0 0.0
        %272 = vmatpush2.msra.mxu0 0.0
        %273 = vmatprep.subr.mxu0 0.0
        %274 = vmatpush2.msra.mxu0 0.0
        %275 = vmatprep.subr.mxu0 0.0
        %276 = vmatpush2.msra.mxu0 0.0
        %277 = vmatprep.subr.mxu0 0.0
        %278 = vmatpush2.msra.mxu0 0.0
        %279 = vmatprep.subr.mxu0 0.0
        %280 = vmatpush2.msra.mxu0 0.0
        %281 = vmatprep.subr.mxu0 0.0
        %282 = vmatpush2.msra.mxu0 0.0
        %283 = vmatprep.subr.mxu0 0.0
        %284 = vmatpush2.msra.mxu0 0.0
        %285 = vmatprep.subr.mxu0 0.0
        %286 = vmatpush2.msra.mxu0 0.0
        %287 = vmatprep.subr.mxu0 0.0
        %288 = vmatpush2.msra.mxu0 0.0
        %289 = vmatprep.mubr.f32.mxu0 0.0
        %290 = vmatmul.mubr.f32.gmra.mxu0 %v214
        %v291 = vpop.f32.mrf.mxu0
        %v292 = vadd.f32 0.0, %v291
        %v293 = vpop.f32.mrf.mxu0
        %294 = vmatprep.mubr.f32.mxu0 0.0
        %295 = vmatmul.mubr.f32.gmra.mxu0 %v217
        %v296 = vpop.f32.mrf.mxu0
        %v297 = vadd.f32 0.0, %v296
        %v298 = vpop.f32.mrf.mxu0
        %299 = vmatprep.mubr.f32.mxu0 0.0
        %300 = vmatmul.mubr.f32.gmra.mxu0 %v220
        %v301 = vpop.f32.mrf.mxu0
        %v302 = vadd.f32 0.0, %v301
        %v303 = vpop.f32.mrf.mxu0
        %304 = vmatprep.mubr.f32.mxu0 0.0
        %305 = vmatmul.mubr.f32.gmra.mxu0 %v223
        %v306 = vpop.f32.mrf.mxu0
        %v307 = vadd.f32 0.0, %v306
        %v308 = vpop.f32.mrf.mxu0
        %309 = vdwg.mxu0
        %v310 = vld [vmem:[%s2] sm:$0xff]
        %v311 = vld [vmem:[%s2 + $0x8] sm:$0xff]
        %v313 = vsel %vm212, %v292, 0
        %v316 = vsel %vm212, %v297, 0
        %v319 = vsel %vm212, %v302, 0
        %v322 = vsel %vm212, %v307, 0
        %324 = vmatprep.subr.mxu0 0.0
        %325 = vmatpush1.msra.mxu0 0.0
        %326 = vmatprep.subr.mxu0 0.0
        %327 = vmatpush1.msra.mxu0 0.0
        %328 = vmatprep.subr.mxu0 0.0
        %329 = vmatpush1.msra.mxu0 0.0
        %330 = vmatprep.subr.mxu0 0.0
        %331 = vmatpush1.msra.mxu0 0.0
        %332 = vmatprep.subr.mxu0 0.0
        %333 = vmatpush1.msra.mxu0 0.0
        %334 = vmatprep.subr.mxu0 0.0
        %335 = vmatpush1.msra.mxu0 0.0
        %336 = vmatprep.subr.mxu0 0.0
        %337 = vmatpush1.msra.mxu0 0.0
        %338 = vmatprep.subr.mxu0 0.0
        %339 = vmatpush1.msra.mxu0 0.0
        %340 = vmatprep.subr.mxu0 0.0
        %341 = vmatpush1.msra.mxu0 0.0
        %342 = vmatprep.subr.mxu0 0.0
        %343 = vmatpush1.msra.mxu0 0.0
        %344 = vmatprep.subr.mxu0 0.0
        %345 = vmatpush1.msra.mxu0 0.0
        %346 = vmatprep.subr.mxu0 0.0
        %347 = vmatpush1.msra.mxu0 0.0
        %348 = vmatprep.subr.mxu0 0.0
        %349 = vmatpush1.msra.mxu0 0.0
        %350 = vmatprep.subr.mxu0 0.0
        %351 = vmatpush1.msra.mxu0 0.0
        %352 = vmatprep.subr.mxu0 0.0
        %353 = vmatpush1.msra.mxu0 %v311
        %354 = vmatprep.subr.mxu0 0.0
        %355 = vmatpush1.msra.mxu0 %v310
        %356 = vmatprep.subr.mxu0 0.0
        %357 = vmatpush2.msra.mxu0 0.0
        %358 = vmatprep.subr.mxu0 0.0
        %359 = vmatpush2.msra.mxu0 0.0
        %360 = vmatprep.subr.mxu0 0.0
        %361 = vmatpush2.msra.mxu0 0.0
        %362 = vmatprep.subr.mxu0 0.0
        %363 = vmatpush2.msra.mxu0 0.0
        %364 = vmatprep.subr.mxu0 0.0
        %365 = vmatpush2.msra.mxu0 0.0
        %366 = vmatprep.subr.mxu0 0.0
        %367 = vmatpush2.msra.mxu0 0.0
        %368 = vmatprep.subr.mxu0 0.0
        %369 = vmatpush2.msra.mxu0 0.0
        %370 = vmatprep.subr.mxu0 0.0
        %371 = vmatpush2.msra.mxu0 0.0
        %372 = vmatprep.subr.mxu0 0.0
        %373 = vmatpush2.msra.mxu0 0.0
        %374 = vmatprep.subr.mxu0 0.0
        %375 = vmatpush2.msra.mxu0 0.0
        %376 = vmatprep.subr.mxu0 0.0
        %377 = vmatpush2.msra.mxu0 0.0
        %378 = vmatprep.subr.mxu0 0.0
        %379 = vmatpush2.msra.mxu0 0.0
        %380 = vmatprep.subr.mxu0 0.0
        %381 = vmatpush2.msra.mxu0 0.0
        %382 = vmatprep.subr.mxu0 0.0
        %383 = vmatpush2.msra.mxu0 0.0
        %384 = vmatprep.subr.mxu0 0.0
        %385 = vmatpush2.msra.mxu0 0.0
        %386 = vmatprep.subr.mxu0 0.0
        %387 = vmatpush2.msra.mxu0 0.0
        %388 = vmatprep.mubr.f32.mxu0 0.0
        %389 = vmatmul.mubr.f32.gmra.mxu0 %v313
        %v390 = vpop.f32.mrf.mxu0
        %v391 = vadd.f32 0.0, %v390
        %v392 = vpop.f32.mrf.mxu0
        %393 = vmatprep.mubr.f32.mxu0 0.0
        %394 = vmatmul.mubr.f32.gmra.mxu0 %v316
        %v395 = vpop.f32.mrf.mxu0
        %v396 = vadd.f32 0.0, %v395
        %v397 = vpop.f32.mrf.mxu0
        %398 = vmatprep.mubr.f32.mxu0 0.0
        %399 = vmatmul.mubr.f32.gmra.mxu0 %v319
        %v400 = vpop.f32.mrf.mxu0
        %v401 = vadd.f32 0.0, %v400
        %v402 = vpop.f32.mrf.mxu0
        %403 = vmatprep.mubr.f32.mxu0 0.0
        %404 = vmatmul.mubr.f32.gmra.mxu0 %v322
        %v405 = vpop.f32.mrf.mxu0
        %v406 = vadd.f32 0.0, %v405
        %v407 = vpop.f32.mrf.mxu0
        %408 = vdwg.mxu0
        %vm409 = vcmask 523264
        %410 = vst.msk [vmem:[%s193] sm:$0xff] %vm409, %v391
        %411 = vst.msk [vmem:[%s193 + $0x8] sm:$0xff] %vm409, %v396
        %412 = vst.msk [vmem:[%s193 + $0x10] sm:$0xff] %vm409, %v401
        %413 = vst.msk [vmem:[%s193 + $0x18] sm:$0xff] %vm409, %v406
        %s414 = sand.u32 %s112, 1
        %s415 = scalar_lea.sflag [#allocation3], %s414
        %s416 = sand.u32 %s112, 1
        %s417 = smul.addr %s416, 32
        %s418 = scalar_lea.vmem [#allocation2], %s417
        // Predicated region
        $region33: #{_anomaly_map_forward.1} parent=31 // pred_check
          %p419 = pneg %p122
        $region34: #{_anomaly_map_forward.1} parent=31 // pred_check_branch
          %421 = sbr.rel (%p419) target = $region36
        $region35: #{_anomaly_map_forward.1} parent=31 // pred_region
          %s422 = smul.u32 4, %s22
          %s424 = ssub.s32 512, 512
          %425 = vsyncadd %s415, %s424
          %s426 = smul.addr %s21, 8
          %s427 = sadd.s32 %s422, %s426
          %s428 = smul.addr %s427, 128
          %s429 = scalar_lea.hbm %s3, %s428
          %s430 = sshll.u32 %s418, 4
          %s431 = int_to_ptr.vmem [resolvable:$true] %s430
          %436 = dma.vmem_to_hbm [thread:$0]  %s431, 512, %s429, %s415, 128, 128, 8
        $region36: #{_anomaly_map_forward.1} parent=31 // pred_fallthru
          _
      $region32: #{_anomaly_map_forward.1} parent=5 // pred_fallthru
        _
      %p437 = scmp.le.s32.totalorder 2, %s12
      // Predicated region
      $region37: #{_anomaly_map_forward.1} parent=5 // pred_check
        %p438 = pneg %p437
      $region38: #{_anomaly_map_forward.1} parent=5 // pred_check_branch
        %440 = sbr.rel (%p438) target = $region40
      $region39: #{_anomaly_map_forward.1} parent=5 // pred_region
        %s441 = ssub.s32 %s12, 2
        // Predicated region
        $region41: #{_anomaly_map_forward.1} parent=39 // pred_check
          %p442 = pneg %p128
        $region42: #{_anomaly_map_forward.1} parent=39 // pred_check_branch
          %444 = sbr.rel (%p442) target = $region44
        $region43: #{_anomaly_map_forward.1} parent=39 // pred_region
          %s445 = sand.u32 %s113, 1
          %s446 = scalar_lea.sflag [#allocation3], %s445
          %s447 = sand.u32 %s113, 1
          %s448 = smul.addr %s447, 32
          %s449 = scalar_lea.vmem [#allocation2], %s448
          %450 = dma.done %s446, 512
        $region44: #{_anomaly_map_forward.1} parent=39 // pred_fallthru
          _
      $region40: #{_anomaly_map_forward.1} parent=5 // pred_fallthru
        _
    $region6: #{_anomaly_map_forward.1} parent=1 // loop_footer
      %s16 = sadd.s32 1, %s12
    $region7: #{_anomaly_map_forward.1} parent=1 // loop_footer_branch
      %11 = sbr.rel target = $region3
    $region8: #{_anomaly_map_forward.1} parent=1 // loop_exit
      _
    %451 = vsyncpa [#allocation3], 1
    %s452 = scalar_lea.sflag [#allocation3], 1
    %453 = vsyncpa %s452, 1

</llo_original>
